<compile_context>
chip_gen: v5e
topology: v5e:2x2
jax: 0.10.0
libtpu: 0.0.40
codegen_flags: <defaults>
</compile_context>

<pallas_src>
import functools
import math

import jax
import jax.numpy as jnp
from jax.experimental import pallas as pl
from jax.experimental.pallas import tpu as pltpu

_LANE = 128     # lane width (last dim)
_SUBLANE = 8    # sublane width (second-to-last dim)


def _round_up(v, m):
    return (v + m - 1) // m * m


def _gelu_exact(y):
    # Exact (erf-based) GELU, matching torch.nn.GELU() default.
    return 0.5 * y * (1.0 + jax.lax.erf(y * (1.0 / math.sqrt(2.0))))


def _fused_mlp_kernel(*refs, num_hidden):
    """Fused MLP forward for one batch tile.

    refs = (x, w0, b0, [wh_stack, bh_stack,] w_last, b_last, out)
    The residual hidden layers are iterated with lax.fori_loop over the
    stacked [L, D, D] weight ref; the activation stays in VMEM/vregs.
    """
    if num_hidden > 0:
        x_ref, w0_ref, b0_ref, wh_ref, bh_ref, wl_ref, bl_ref, out_ref = refs
    else:
        x_ref, w0_ref, b0_ref, wl_ref, bl_ref, out_ref = refs
        wh_ref = bh_ref = None

    # ---- layer 0: x = gelu(x @ W0 + b0); carry is f32 ----------------------
    y = jnp.dot(x_ref[...].astype(w0_ref.dtype), w0_ref[...],
                preferred_element_type=jnp.float32)
    x = _gelu_exact(y + b0_ref[...].astype(jnp.float32))

    # ---- hidden residual layers: x = x + gelu(x @ Wl + bl) -----------------
    if num_hidden > 0:
        w_dtype = wh_ref.dtype

        def body(l, x):
            w = wh_ref[l]            # (Dh_p, Dh_p) slice of stacked weights
            b = bh_ref[l]            # (1, Dh_p)
            y = jnp.dot(x.astype(w_dtype), w,
                        preferred_element_type=jnp.float32)
            return x + _gelu_exact(y + b.astype(jnp.float32))

        x = jax.lax.fori_loop(0, num_hidden, body, x)

    # ---- last layer: plain Linear -------------------------------------------
    y = jnp.dot(x.astype(wl_ref.dtype), wl_ref[...],
                preferred_element_type=jnp.float32)
    out_ref[...] = (y + bl_ref[...].astype(jnp.float32)).astype(out_ref.dtype)


def mlp_forward(params, x, *, batch_tile=256, weight_dtype=None):
    """Fused Pallas forward of the whole MLP.

    params : list of (w, b), w: [fan_in, fan_out], b: [fan_out]
             (params[0] = first layer, params[1:-1] = identical hidden layers,
              params[-1] = last layer)
    x      : [B, dim_in]
    batch_tile : rows per grid step; sweep {256, 512, 1024} for large batches
                 (v7x: keep an eye on the 64 MiB VMEM budget).
    weight_dtype : optional dtype to store/feed weights in (e.g. jnp.bfloat16
                   for bf16-native MXU; loosens numerics vs fp32).
    returns: [B, dim_out]
    """
    n = len(params)
    assert n >= 2, "MLP needs at least a first and a last Linear layer"
    num_hidden = n - 2

    B, Din = x.shape
    Dh = params[0][0].shape[1]
    Dout = params[-1][0].shape[1]

    wdt = jnp.dtype(weight_dtype) if weight_dtype is not None else params[0][0].dtype

    # --- zero-pad every feature dim to a lane multiple (lane-dense) ---------
    Din_p = _round_up(Din, _LANE)
    Dh_p = _round_up(Dh, _LANE)
    Dout_p = _round_up(Dout, _LANE)

    def pad_wb(w, b, di_p, do_p):
        wp = jnp.zeros((di_p, do_p), wdt).at[:w.shape[0], :w.shape[1]].set(
            w.astype(wdt))
        bp = jnp.zeros((1, do_p), wdt).at[0, :b.shape[0]].set(b.astype(wdt))
        return wp, bp

    w0p, b0p = pad_wb(*params[0], Din_p, Dh_p)
    wlp, blp = pad_wb(*params[-1], Dh_p, Dout_p)
    if num_hidden > 0:
        hidden = [pad_wb(w, b, Dh_p, Dh_p) for (w, b) in params[1:-1]]
        wh = jnp.stack([h[0] for h in hidden])          # [L, Dh_p, Dh_p]
        bh = jnp.stack([h[1] for h in hidden])          # [L, 1,    Dh_p]

    # --- batch tiling --------------------------------------------------------
    tb = min(_round_up(batch_tile, _SUBLANE), _round_up(B, _SUBLANE))
    # v7x has 2 TensorCores: make sure the grid has >= 2 tiles when possible
    # so dimension_semantics=("parallel",) actually shards across both cores.
    if B >= 2 * _SUBLANE and _round_up(B, tb) // tb < 2:
        tb = _round_up(-(-B // 2), _SUBLANE)
    Bp = _round_up(B, tb)

    # Skip the wrapper-side pad copy when x is already aligned (it is a full
    # extra HBM read+write of the activation otherwise).
    if Bp == B and Din_p == Din:
        xp = x
    else:
        xp = jnp.zeros((Bp, Din_p), x.dtype).at[:B, :Din].set(x)

    # --- inputs in kernel-argument order -------------------------------------
    inputs = [xp, w0p, b0p]
    resident = [w0p, b0p]
    if num_hidden > 0:
        inputs += [wh, bh]
        resident += [wh, bh]
    inputs += [wlp, blp]
    resident += [wlp, blp]
    resident_shapes = [tuple(a.shape) for a in resident]

    kernel = functools.partial(_fused_mlp_kernel, num_hidden=num_hidden)
    grid = (Bp // tb,)
    act_itemsize = jnp.dtype(x.dtype).itemsize
    w_itemsize = jnp.dtype(wdt).itemsize

    def call(single_buffer):
        def const_spec(shape):
            ndim = len(shape)
            index_map = lambda i, _n=ndim: (0,) * _n
            if single_buffer:
                # Constant block index -> a second pipeline buffer is pure
                # waste; keep a single VMEM-resident copy.
                return pl.BlockSpec(shape, index_map,
                                    pipeline_mode=pl.Buffered(1))
            return pl.BlockSpec(shape, index_map)

        in_specs = [pl.BlockSpec((tb, Din_p), lambda i: (i, 0))]
        in_specs += [const_spec(s) for s in resident_shapes]
        out_spec = pl.BlockSpec((tb, Dout_p), lambda i: (i, 0))

        # --- explicit VMEM budget (with ~30% headroom, capped at 64 MiB) ----
        wbuf = 1 if single_buffer else 2
        weight_bytes = sum(math.prod(s) for s in resident_shapes) * w_itemsize * wbuf
        act_bytes = 2 * tb * (Din_p + Dout_p) * act_itemsize   # double-buffered tiles
        interm_bytes = 4 * tb * max(Dh_p, Dout_p) * 4          # f32 in-flight values
        needed = weight_bytes + act_bytes + interm_bytes
        vmem_limit = min(max(int(needed * 1.3), 16 << 20), 64 << 20)

        return pl.pallas_call(
            kernel,
            out_shape=jax.ShapeDtypeStruct((Bp, Dout_p), x.dtype),
            grid=grid,
            in_specs=in_specs,
            out_specs=out_spec,
            compiler_params=pltpu.CompilerParams(
                dimension_semantics=("parallel",),
                vmem_limit_bytes=vmem_limit,
            ),
        )(*inputs)

    try:
        out_p = call(single_buffer=True)
    except Exception:
        # pl.Buffered(1) not accepted by this jax/libtpu combination; fall
        # back to default (double-buffered) specs — identical semantics.
        out_p = call(single_buffer=False)

    if Bp == B and Dout_p == Dout:
        return out_p
    return out_p[:B, :Dout]


def init_mlp_params(key, dim_in, dim_hidden, dim_out, num_layer):
    """Deterministic init mimicking nn.Linear default (U[-1/sqrt(fan_in), +])."""
    dims = (
        [(dim_in, dim_hidden)]
        + [(dim_hidden, dim_hidden) for _ in range(num_layer)]
        + [(dim_hidden, dim_out)]
    )
    params = []
    for fan_in, fan_out in dims:
        key, kw, kb = jax.random.split(key, 3)
        bound = 1.0 / math.sqrt(fan_in)
        w = jax.random.uniform(
            kw, (fan_in, fan_out), jnp.float32, minval=-bound, maxval=bound
        )
        b = jax.random.uniform(
            kb, (fan_out,), jnp.float32, minval=-bound, maxval=bound
        )
        params.append((w, b))
    return params


if __name__ == "__main__":
    # Small shapes consistent with the module: MLP(dim_in=32, dim_hidden=64,
    # dim_out=16, num_layer=2) applied to a batch of 8 vectors.
    dim_in, dim_hidden, dim_out, num_layer = 32, 64, 16, 2
    batch = 8

    key = jax.random.PRNGKey(0)
    key, kx = jax.random.split(key)
    x = jax.random.normal(kx, (batch, dim_in), dtype=jnp.float32)

    params = init_mlp_params(key, dim_in, dim_hidden, dim_out, num_layer)

    out = mlp_forward(params, x)
    out = jax.block_until_ready(out)

    assert out.shape == (batch, dim_out)
    assert bool(jnp.all(jnp.isfinite(out)))

    # Pure-JAX reference check of the exact forward semantics.
    def ref_forward(params, x):
        n = len(params)
        for idx, (w, b) in enumerate(params):
            if idx == 0:
                x = jax.nn.gelu(x @ w + b, approximate=False)
            elif idx == n - 1:
                x = x @ w + b
            else:
                x = x + jax.nn.gelu(x @ w + b, approximate=False)
        return x

    ref = ref_forward(params, x)
    assert bool(jnp.allclose(out, ref, atol=1e-5, rtol=1e-5))

    print("KERNEL_OK")
</pallas_src>

<mosaic_0001>
module attributes {stable_mosaic.version = 11 : i64} {
  func.func @_fused_mlp_kernel(%arg0: i32, %arg1: memref<8x128xf32, #tpu.memory_space<vmem>>, %arg2: memref<128x128xf32, #tpu.memory_space<vmem>>, %arg3: memref<1x128xf32, #tpu.memory_space<vmem>>, %arg4: memref<2x128x128xf32, #tpu.memory_space<vmem>>, %arg5: memref<2x1x128xf32, #tpu.memory_space<vmem>>, %arg6: memref<128x128xf32, #tpu.memory_space<vmem>>, %arg7: memref<1x128xf32, #tpu.memory_space<vmem>>, %arg8: memref<8x128xf32, #tpu.memory_space<vmem>>) attributes {dimension_semantics = [#tpu.dimension_semantics<parallel>], iteration_bounds = array<i64: 1>, scalar_prefetch = 0 : i64, scratch_operands = 0 : i64, tpu.core_type = #tpu.core_type<tc>, window_params = [{transform_indices = @transform_0, window_bounds = array<i64: 8, 128>}, {pipeline_mode = #tpu.pipeline_mode<synchronous>, transform_indices = @transform_1, window_bounds = array<i64: 128, 128>}, {pipeline_mode = #tpu.pipeline_mode<synchronous>, transform_indices = @transform_2, window_bounds = array<i64: 1, 128>}, {pipeline_mode = #tpu.pipeline_mode<synchronous>, transform_indices = @transform_3, window_bounds = array<i64: 2, 128, 128>}, {pipeline_mode = #tpu.pipeline_mode<synchronous>, transform_indices = @transform_4, window_bounds = array<i64: 2, 1, 128>}, {pipeline_mode = #tpu.pipeline_mode<synchronous>, transform_indices = @transform_5, window_bounds = array<i64: 128, 128>}, {pipeline_mode = #tpu.pipeline_mode<synchronous>, transform_indices = @transform_6, window_bounds = array<i64: 1, 128>}, {transform_indices = @transform_7, window_bounds = array<i64: 8, 128>}]} {
    %c0 = arith.constant 0 : index
    %c0_0 = arith.constant 0 : index
    %0 = vector.load %arg1[%c0, %c0_0] : memref<8x128xf32, #tpu.memory_space<vmem>>, vector<8x128xf32>
    %c0_1 = arith.constant 0 : index
    %c0_2 = arith.constant 0 : index
    %1 = vector.load %arg2[%c0_1, %c0_2] : memref<128x128xf32, #tpu.memory_space<vmem>>, vector<128x128xf32>
    %cst = arith.constant dense<0.000000e+00> : vector<8x128xf32>
    %2 = tpu.matmul %0, %1, %cst {dimension_numbers = #tpu.dot_dimension_numbers<[1], [0], [0], [1], [0, 0, 1, 1], [], []>} : vector<8x128xf32>, vector<128x128xf32>, vector<8x128xf32> -> vector<8x128xf32>
    %c0_3 = arith.constant 0 : index
    %c0_4 = arith.constant 0 : index
    %3 = vector.load %arg3[%c0_3, %c0_4] : memref<1x128xf32, #tpu.memory_space<vmem>>, vector<1x128xf32>
    %4 = vector.broadcast %3 : vector<1x128xf32> to vector<8x128xf32>
    %5 = arith.addf %2, %4 : vector<8x128xf32>
    %cst_5 = arith.constant 5.000000e-01 : f32
    %6 = vector.broadcast %cst_5 : f32 to vector<8x128xf32>
    %7 = arith.mulf %6, %5 : vector<8x128xf32>
    %cst_6 = arith.constant 0.707106769 : f32
    %8 = vector.broadcast %cst_6 : f32 to vector<8x128xf32>
    %9 = arith.mulf %5, %8 : vector<8x128xf32>
    %10 = math.erf %9 : vector<8x128xf32>
    %cst_7 = arith.constant 1.000000e+00 : f32
    %11 = vector.broadcast %cst_7 : f32 to vector<8x128xf32>
    %12 = arith.addf %11, %10 : vector<8x128xf32>
    %13 = arith.mulf %7, %12 : vector<8x128xf32>
    %c0_i32 = arith.constant 0 : i32
    %c2_i32 = arith.constant 2 : i32
    %14 = arith.addi %c0_i32, %c2_i32 : i32
    %c1_i32 = arith.constant 1 : i32
    %15 = scf.for %arg9 = %c0_i32 to %14 step %c1_i32 iter_args(%arg10 = %13) -> (vector<8x128xf32>)  : i32 {
      %22 = arith.index_cast %arg9 : i32 to index
      %c0_16 = arith.constant 0 : index
      %c0_17 = arith.constant 0 : index
      %23 = vector.load %arg4[%22, %c0_16, %c0_17] : memref<2x128x128xf32, #tpu.memory_space<vmem>>, vector<1x128x128xf32>
      %24 = vector.shape_cast %23 : vector<1x128x128xf32> to vector<128x128xf32>
      %25 = arith.index_cast %arg9 : i32 to index
      %c0_18 = arith.constant 0 : index
      %c0_19 = arith.constant 0 : index
      %26 = vector.load %arg5[%25, %c0_18, %c0_19] : memref<2x1x128xf32, #tpu.memory_space<vmem>>, vector<1x1x128xf32>
      %27 = vector.shape_cast %26 : vector<1x1x128xf32> to vector<1x128xf32>
      %cst_20 = arith.constant dense<0.000000e+00> : vector<8x128xf32>
      %28 = tpu.matmul %arg10, %24, %cst_20 {dimension_numbers = #tpu.dot_dimension_numbers<[1], [0], [0], [1], [0, 0, 1, 1], [], []>} : vector<8x128xf32>, vector<128x128xf32>, vector<8x128xf32> -> vector<8x128xf32>
      %29 = vector.broadcast %27 : vector<1x128xf32> to vector<8x128xf32>
      %30 = arith.addf %28, %29 : vector<8x128xf32>
      %cst_21 = arith.constant 5.000000e-01 : f32
      %31 = vector.broadcast %cst_21 : f32 to vector<8x128xf32>
      %32 = arith.mulf %31, %30 : vector<8x128xf32>
      %cst_22 = arith.constant 0.707106769 : f32
      %33 = vector.broadcast %cst_22 : f32 to vector<8x128xf32>
      %34 = arith.mulf %30, %33 : vector<8x128xf32>
      %35 = math.erf %34 : vector<8x128xf32>
      %cst_23 = arith.constant 1.000000e+00 : f32
      %36 = vector.broadcast %cst_23 : f32 to vector<8x128xf32>
      %37 = arith.addf %36, %35 : vector<8x128xf32>
      %38 = arith.mulf %32, %37 : vector<8x128xf32>
      %39 = arith.addf %arg10, %38 : vector<8x128xf32>
      scf.yield %39 : vector<8x128xf32>
    }
    %c2_i32_8 = arith.constant 2 : i32
    %c0_9 = arith.constant 0 : index
    %c0_10 = arith.constant 0 : index
    %16 = vector.load %arg6[%c0_9, %c0_10] : memref<128x128xf32, #tpu.memory_space<vmem>>, vector<128x128xf32>
    %cst_11 = arith.constant dense<0.000000e+00> : vector<8x128xf32>
    %17 = tpu.matmul %15, %16, %cst_11 {dimension_numbers = #tpu.dot_dimension_numbers<[1], [0], [0], [1], [0, 0, 1, 1], [], []>} : vector<8x128xf32>, vector<128x128xf32>, vector<8x128xf32> -> vector<8x128xf32>
    %c0_12 = arith.constant 0 : index
    %c0_13 = arith.constant 0 : index
    %18 = vector.load %arg7[%c0_12, %c0_13] : memref<1x128xf32, #tpu.memory_space<vmem>>, vector<1x128xf32>
    %19 = vector.broadcast %18 : vector<1x128xf32> to vector<8x128xf32>
    %20 = arith.addf %17, %19 : vector<8x128xf32>
    %c0_14 = arith.constant 0 : index
    %c0_15 = arith.constant 0 : index
    %21 = vector.load %arg8[%c0_14, %c0_15] : memref<8x128xf32, #tpu.memory_space<vmem>>, vector<8x128xf32>
    tpu.vector_store %arg8[%c0_14, %c0_15], %20 {strides = array<i32>} : memref<8x128xf32, #tpu.memory_space<vmem>>, vector<8x128xf32>,
    return
  }
  func.func @transform_0(%arg0: i32) -> (i32, i32) {
    %c0_i32 = arith.constant 0 : i32
    %c0_i32_0 = arith.constant 0 : i32
    return %arg0, %c0_i32 : i32, i32
  }
  func.func @transform_1(%arg0: i32) -> (i32, i32) {
    %c0_i32 = arith.constant 0 : i32
    %c0_i32_0 = arith.constant 0 : i32
    %c0_i32_1 = arith.constant 0 : i32
    return %c0_i32, %c0_i32_0 : i32, i32
  }
  func.func @transform_2(%arg0: i32) -> (i32, i32) {
    %c0_i32 = arith.constant 0 : i32
    %c0_i32_0 = arith.constant 0 : i32
    %c0_i32_1 = arith.constant 0 : i32
    return %c0_i32, %c0_i32_0 : i32, i32
  }
  func.func @transform_3(%arg0: i32) -> (i32, i32, i32) {
    %c0_i32 = arith.constant 0 : i32
    %c0_i32_0 = arith.constant 0 : i32
    %c0_i32_1 = arith.constant 0 : i32
    %c0_i32_2 = arith.constant 0 : i32
    return %c0_i32, %c0_i32_0, %c0_i32_1 : i32, i32, i32
  }
  func.func @transform_4(%arg0: i32) -> (i32, i32, i32) {
    %c0_i32 = arith.constant 0 : i32
    %c0_i32_0 = arith.constant 0 : i32
    %c0_i32_1 = arith.constant 0 : i32
    %c0_i32_2 = arith.constant 0 : i32
    return %c0_i32, %c0_i32_0, %c0_i32_1 : i32, i32, i32
  }
  func.func @transform_5(%arg0: i32) -> (i32, i32) {
    %c0_i32 = arith.constant 0 : i32
    %c0_i32_0 = arith.constant 0 : i32
    %c0_i32_1 = arith.constant 0 : i32
    return %c0_i32, %c0_i32_0 : i32, i32
  }
  func.func @transform_6(%arg0: i32) -> (i32, i32) {
    %c0_i32 = arith.constant 0 : i32
    %c0_i32_0 = arith.constant 0 : i32
    %c0_i32_1 = arith.constant 0 : i32
    return %c0_i32, %c0_i32_0 : i32, i32
  }
  func.func @transform_7(%arg0: i32) -> (i32, i32) {
    %c0_i32 = arith.constant 0 : i32
    %c0_i32_0 = arith.constant 0 : i32
    return %arg0, %c0_i32 : i32, i32
  }
}

module attributes {stable_mosaic.version = 11 : i64} {
  func.func @_fused_mlp_kernel(%arg0: i32, %arg1: memref<8x128xf32, #tpu.memory_space<vmem>>, %arg2: memref<128x128xf32, #tpu.memory_space<vmem>>, %arg3: memref<1x128xf32, #tpu.memory_space<vmem>>, %arg4: memref<2x128x128xf32, #tpu.memory_space<vmem>>, %arg5: memref<2x1x128xf32, #tpu.memory_space<vmem>>, %arg6: memref<128x128xf32, #tpu.memory_space<vmem>>, %arg7: memref<1x128xf32, #tpu.memory_space<vmem>>, %arg8: memref<8x128xf32, #tpu.memory_space<vmem>>) attributes {dimension_semantics = [#tpu.dimension_semantics<parallel>], iteration_bounds = array<i64: 1>, scalar_prefetch = 0 : i64, scratch_operands = 0 : i64, tpu.core_type = #tpu.core_type<tc>, window_params = [{transform_indices = @transform_0, window_bounds = array<i64: 8, 128>}, {pipeline_mode = #tpu.pipeline_mode<synchronous>, transform_indices = @transform_1, window_bounds = array<i64: 128, 128>}, {pipeline_mode = #tpu.pipeline_mode<synchronous>, transform_indices = @transform_2, window_bounds = array<i64: 1, 128>}, {pipeline_mode = #tpu.pipeline_mode<synchronous>, transform_indices = @transform_3, window_bounds = array<i64: 2, 128, 128>}, {pipeline_mode = #tpu.pipeline_mode<synchronous>, transform_indices = @transform_4, window_bounds = array<i64: 2, 1, 128>}, {pipeline_mode = #tpu.pipeline_mode<synchronous>, transform_indices = @transform_5, window_bounds = array<i64: 128, 128>}, {pipeline_mode = #tpu.pipeline_mode<synchronous>, transform_indices = @transform_6, window_bounds = array<i64: 1, 128>}, {transform_indices = @transform_7, window_bounds = array<i64: 8, 128>}]} {
    %c0 = arith.constant 0 : index
    %c0_0 = arith.constant 0 : index
    %0 = vector.load %arg1[%c0, %c0_0] : memref<8x128xf32, #tpu.memory_space<vmem>>, vector<8x128xf32>
    %c0_1 = arith.constant 0 : index
    %c0_2 = arith.constant 0 : index
    %1 = vector.load %arg2[%c0_1, %c0_2] : memref<128x128xf32, #tpu.memory_space<vmem>>, vector<128x128xf32>
    %cst = arith.constant dense<0.000000e+00> : vector<8x128xf32>
    %2 = tpu.matmul %0, %1, %cst {dimension_numbers = #tpu.dot_dimension_numbers<[1], [0], [0], [1], [0, 0, 1, 1], [], []>} : vector<8x128xf32>, vector<128x128xf32>, vector<8x128xf32> -> vector<8x128xf32>
    %c0_3 = arith.constant 0 : index
    %c0_4 = arith.constant 0 : index
    %3 = vector.load %arg3[%c0_3, %c0_4] : memref<1x128xf32, #tpu.memory_space<vmem>>, vector<1x128xf32>
    %4 = vector.broadcast %3 : vector<1x128xf32> to vector<8x128xf32>
    %5 = arith.addf %2, %4 : vector<8x128xf32>
    %cst_5 = arith.constant 5.000000e-01 : f32
    %6 = vector.broadcast %cst_5 : f32 to vector<8x128xf32>
    %7 = arith.mulf %6, %5 : vector<8x128xf32>
    %cst_6 = arith.constant 0.707106769 : f32
    %8 = vector.broadcast %cst_6 : f32 to vector<8x128xf32>
    %9 = arith.mulf %5, %8 : vector<8x128xf32>
    %10 = math.erf %9 : vector<8x128xf32>
    %cst_7 = arith.constant 1.000000e+00 : f32
    %11 = vector.broadcast %cst_7 : f32 to vector<8x128xf32>
    %12 = arith.addf %11, %10 : vector<8x128xf32>
    %13 = arith.mulf %7, %12 : vector<8x128xf32>
    %c0_i32 = arith.constant 0 : i32
    %c2_i32 = arith.constant 2 : i32
    %14 = arith.addi %c0_i32, %c2_i32 : i32
    %c1_i32 = arith.constant 1 : i32
    %15 = scf.for %arg9 = %c0_i32 to %14 step %c1_i32 iter_args(%arg10 = %13) -> (vector<8x128xf32>)  : i32 {
      %22 = arith.index_cast %arg9 : i32 to index
      %c0_16 = arith.constant 0 : index
      %c0_17 = arith.constant 0 : index
      %23 = vector.load %arg4[%22, %c0_16, %c0_17] : memref<2x128x128xf32, #tpu.memory_space<vmem>>, vector<1x128x128xf32>
      %24 = vector.shape_cast %23 : vector<1x128x128xf32> to vector<128x128xf32>
      %25 = arith.index_cast %arg9 : i32 to index
      %c0_18 = arith.constant 0 : index
      %c0_19 = arith.constant 0 : index
      %26 = vector.load %arg5[%25, %c0_18, %c0_19] : memref<2x1x128xf32, #tpu.memory_space<vmem>>, vector<1x1x128xf32>
      %27 = vector.shape_cast %26 : vector<1x1x128xf32> to vector<1x128xf32>
      %cst_20 = arith.constant dense<0.000000e+00> : vector<8x128xf32>
      %28 = tpu.matmul %arg10, %24, %cst_20 {dimension_numbers = #tpu.dot_dimension_numbers<[1], [0], [0], [1], [0, 0, 1, 1], [], []>} : vector<8x128xf32>, vector<128x128xf32>, vector<8x128xf32> -> vector<8x128xf32>
      %29 = vector.broadcast %27 : vector<1x128xf32> to vector<8x128xf32>
      %30 = arith.addf %28, %29 : vector<8x128xf32>
      %cst_21 = arith.constant 5.000000e-01 : f32
      %31 = vector.broadcast %cst_21 : f32 to vector<8x128xf32>
      %32 = arith.mulf %31, %30 : vector<8x128xf32>
      %cst_22 = arith.constant 0.707106769 : f32
      %33 = vector.broadcast %cst_22 : f32 to vector<8x128xf32>
      %34 = arith.mulf %30, %33 : vector<8x128xf32>
      %35 = math.erf %34 : vector<8x128xf32>
      %cst_23 = arith.constant 1.000000e+00 : f32
      %36 = vector.broadcast %cst_23 : f32 to vector<8x128xf32>
      %37 = arith.addf %36, %35 : vector<8x128xf32>
      %38 = arith.mulf %32, %37 : vector<8x128xf32>
      %39 = arith.addf %arg10, %38 : vector<8x128xf32>
      scf.yield %39 : vector<8x128xf32>
    }
    %c2_i32_8 = arith.constant 2 : i32
    %c0_9 = arith.constant 0 : index
    %c0_10 = arith.constant 0 : index
    %16 = vector.load %arg6[%c0_9, %c0_10] : memref<128x128xf32, #tpu.memory_space<vmem>>, vector<128x128xf32>
    %cst_11 = arith.constant dense<0.000000e+00> : vector<8x128xf32>
    %17 = tpu.matmul %15, %16, %cst_11 {dimension_numbers = #tpu.dot_dimension_numbers<[1], [0], [0], [1], [0, 0, 1, 1], [], []>} : vector<8x128xf32>, vector<128x128xf32>, vector<8x128xf32> -> vector<8x128xf32>
    %c0_12 = arith.constant 0 : index
    %c0_13 = arith.constant 0 : index
    %18 = vector.load %arg7[%c0_12, %c0_13] : memref<1x128xf32, #tpu.memory_space<vmem>>, vector<1x128xf32>
    %19 = vector.broadcast %18 : vector<1x128xf32> to vector<8x128xf32>
    %20 = arith.addf %17, %19 : vector<8x128xf32>
    %c0_14 = arith.constant 0 : index
    %c0_15 = arith.constant 0 : index
    %21 = vector.load %arg8[%c0_14, %c0_15] : memref<8x128xf32, #tpu.memory_space<vmem>>, vector<8x128xf32>
    tpu.vector_store %arg8[%c0_14, %c0_15], %20 {strides = array<i32>} : memref<8x128xf32, #tpu.memory_space<vmem>>, vector<8x128xf32>,
    return
  }
  func.func @transform_0(%arg0: i32) -> (i32, i32) {
    %c0_i32 = arith.constant 0 : i32
    %c0_i32_0 = arith.constant 0 : i32
    return %arg0, %c0_i32 : i32, i32
  }
  func.func @transform_1(%arg0: i32) -> (i32, i32) {
    %c0_i32 = arith.constant 0 : i32
    %c0_i32_0 = arith.constant 0 : i32
    %c0_i32_1 = arith.constant 0 : i32
    return %c0_i32, %c0_i32_0 : i32, i32
  }
  func.func @transform_2(%arg0: i32) -> (i32, i32) {
    %c0_i32 = arith.constant 0 : i32
    %c0_i32_0 = arith.constant 0 : i32
    %c0_i32_1 = arith.constant 0 : i32
    return %c0_i32, %c0_i32_0 : i32, i32
  }
  func.func @transform_3(%arg0: i32) -> (i32, i32, i32) {
    %c0_i32 = arith.constant 0 : i32
    %c0_i32_0 = arith.constant 0 : i32
    %c0_i32_1 = arith.constant 0 : i32
    %c0_i32_2 = arith.constant 0 : i32
    return %c0_i32, %c0_i32_0, %c0_i32_1 : i32, i32, i32
  }
  func.func @transform_4(%arg0: i32) -> (i32, i32, i32) {
    %c0_i32 = arith.constant 0 : i32
    %c0_i32_0 = arith.constant 0 : i32
    %c0_i32_1 = arith.constant 0 : i32
    %c0_i32_2 = arith.constant 0 : i32
    return %c0_i32, %c0_i32_0, %c0_i32_1 : i32, i32, i32
  }
  func.func @transform_5(%arg0: i32) -> (i32, i32) {
    %c0_i32 = arith.constant 0 : i32
    %c0_i32_0 = arith.constant 0 : i32
    %c0_i32_1 = arith.constant 0 : i32
    return %c0_i32, %c0_i32_0 : i32, i32
  }
  func.func @transform_6(%arg0: i32) -> (i32, i32) {
    %c0_i32 = arith.constant 0 : i32
    %c0_i32_0 = arith.constant 0 : i32
    %c0_i32_1 = arith.constant 0 : i32
    return %c0_i32, %c0_i32_0 : i32, i32
  }
  func.func @transform_7(%arg0: i32) -> (i32, i32) {
    %c0_i32 = arith.constant 0 : i32
    %c0_i32_0 = arith.constant 0 : i32
    return %arg0, %c0_i32 : i32, i32
  }
}

</mosaic_0001>

<llo_original>
// kernel: tpu_custom_call.1
$region0: #{tpu_custom_call.1}
  #allocation0 [shape = 'u32[]', space=smem, size = 0x4, offset = 0x4, fixed_abs, tag = 'smem constant byte address 0x4 - core index']
  #allocation1 [shape = 'u32[72,128]{1,0:T(1,128)}', space=vmem, size = 0x9000, scoped, tag = 'internal scratch']
  %s0 = inlined_call_operand.hbm [shape: f32[8,128], index: 0, kind: input, shape index: {}]
  %s1 = inlined_call_operand.hbm [shape: f32[128,128], index: 1, kind: input, shape index: {}]
  %s2 = inlined_call_operand.vmem [shape: f32[1,128], index: 2, kind: input, shape index: {}]
  %s3 = inlined_call_operand.hbm [shape: f32[2,128,128], index: 3, kind: input, shape index: {}]
  %s4 = inlined_call_operand.vmem [shape: f32[2,1,128], index: 4, kind: input, shape index: {}]
  %s5 = inlined_call_operand.hbm [shape: f32[128,128], index: 5, kind: input, shape index: {}]
  %s6 = inlined_call_operand.vmem [shape: f32[1,128], index: 6, kind: input, shape index: {}]
  %s7 = inlined_call_operand.hbm [shape: f32[8,128], index: 7, kind: output, shape index: {}]
  %s8 = sld [smem:[#allocation0]]
  $region61: #{tpu_custom_call.1} parent=0
    _
  %s10 = ssub.s32 1, %s8
  %s11 = scalar_select 0, %s10, %s8
  $region1: #{tpu_custom_call.1} parent=0
    #allocation2 [shape = 'u8[4096]{0}', space=vmem, size = 0x1000, scoped, tag = 'input window, operand 0, single buffered']
    #allocation3 [shape = 's32[1]{0}', space=sflag, size = 0x4, scoped, tag = 'scoped memory for tpu_custom_call.1']
    #allocation4 [shape = 's32[1]{0}', space=sflag, size = 0x4, scoped, tag = 'scoped memory for tpu_custom_call.1']
    #allocation5 [shape = 'u8[65536]{0}', space=vmem, size = 0x10000, scoped, tag = 'input window, operand 1, single buffered']
    #allocation6 [shape = 's32[1]{0}', space=sflag, size = 0x4, scoped, tag = 'scoped memory for tpu_custom_call.1']
    #allocation7 [shape = 'u8[131072]{0}', space=vmem, size = 0x20000, scoped, tag = 'input window, operand 3, single buffered']
    #allocation8 [shape = 'u8[65536]{0}', space=vmem, size = 0x10000, scoped, tag = 'input window, operand 5, single buffered']
    #allocation9 [shape = 's32[1]{0}', space=sflag, size = 0x4, scoped, tag = 'scoped memory for tpu_custom_call.1']
    #allocation10 [shape = 'u8[4096]{0}', space=vmem, size = 0x1000, scoped, tag = 'output window, operand 0, single buffered']
    %12 = vsyncpa [#allocation3], 0
    %13 = vsyncpa [#allocation6], 0
    %14 = vsyncpa [#allocation9], 0
    %15 = vsyncpa [#allocation4], 0
    // Predicated region
    $region2: #{tpu_custom_call.1} parent=1 // pred_check
      _
    $region3: #{tpu_custom_call.1} parent=1 // pred_check_branch
      %17 = sbr.rel (0) target = $region5
    $region4: #{tpu_custom_call.1} parent=1 // pred_region
      %19 = vsyncadd [#allocation3], 0
      %s21 = sshll.u32 %s0, 4
      %s22 = int_to_ptr.hbm [resolvable:$true] %s21
      %s23 = sshll.u32 [#allocation2], 4
      %s24 = int_to_ptr.vmem [resolvable:$true] %s23
      %26 = dma.hbm_to_vmem [thread:$0]  %s22, 128, %s24, [#allocation3]
    $region5: #{tpu_custom_call.1} parent=1 // pred_fallthru
      _
    // Predicated region
    $region6: #{tpu_custom_call.1} parent=1 // pred_check
      _
    $region7: #{tpu_custom_call.1} parent=1 // pred_check_branch
      %28 = sbr.rel (0) target = $region9
    $region8: #{tpu_custom_call.1} parent=1 // pred_region
      %30 = vsyncadd [#allocation6], 0
      %s31 = sshll.u32 %s1, 4
      %s32 = int_to_ptr.hbm [resolvable:$true] %s31
      %s33 = sshll.u32 [#allocation5], 4
      %s34 = int_to_ptr.vmem [resolvable:$true] %s33
      %39 = dma.hbm_to_vmem [thread:$0]  %s32, 2048, %s34, [#allocation6], 128, 128, 8
    $region9: #{tpu_custom_call.1} parent=1 // pred_fallthru
      _
    // Predicated region
    $region10: #{tpu_custom_call.1} parent=1 // pred_check
      _
    $region11: #{tpu_custom_call.1} parent=1 // pred_check_branch
      %41 = sbr.rel (0) target = $region13
    $region12: #{tpu_custom_call.1} parent=1 // pred_region
      _
    $region13: #{tpu_custom_call.1} parent=1 // pred_fallthru
      _
    // Predicated region
    $region14: #{tpu_custom_call.1} parent=1 // pred_check
      _
    $region15: #{tpu_custom_call.1} parent=1 // pred_check_branch
      %43 = sbr.rel (0) target = $region17
    $region16: #{tpu_custom_call.1} parent=1 // pred_region
      %45 = vsyncadd [#allocation6], 0
      %s46 = sshll.u32 %s3, 4
      %s47 = int_to_ptr.hbm [resolvable:$true] %s46
      %s48 = sshll.u32 [#allocation7], 4
      %s49 = int_to_ptr.vmem [resolvable:$true] %s48
      %54 = dma.hbm_to_vmem [thread:$0]  %s47, 4096, %s49, [#allocation6], 128, 128, 8
    $region17: #{tpu_custom_call.1} parent=1 // pred_fallthru
      _
    // Predicated region
    $region18: #{tpu_custom_call.1} parent=1 // pred_check
      _
    $region19: #{tpu_custom_call.1} parent=1 // pred_check_branch
      %56 = sbr.rel (0) target = $region21
    $region20: #{tpu_custom_call.1} parent=1 // pred_region
      _
    $region21: #{tpu_custom_call.1} parent=1 // pred_fallthru
      _
    // Predicated region
    $region22: #{tpu_custom_call.1} parent=1 // pred_check
      _
    $region23: #{tpu_custom_call.1} parent=1 // pred_check_branch
      %58 = sbr.rel (0) target = $region25
    $region24: #{tpu_custom_call.1} parent=1 // pred_region
      %60 = vsyncadd [#allocation9], 0
      %s61 = sshll.u32 %s5, 4
      %s62 = int_to_ptr.hbm [resolvable:$true] %s61
      %s63 = sshll.u32 [#allocation8], 4
      %s64 = int_to_ptr.vmem [resolvable:$true] %s63
      %69 = dma.hbm_to_vmem [thread:$0]  %s62, 2048, %s64, [#allocation9], 128, 128, 8
    $region25: #{tpu_custom_call.1} parent=1 // pred_fallthru
      _
    // Predicated region
    $region26: #{tpu_custom_call.1} parent=1 // pred_check
      _
    $region27: #{tpu_custom_call.1} parent=1 // pred_check_branch
      %71 = sbr.rel (0) target = $region29
    $region28: #{tpu_custom_call.1} parent=1 // pred_region
      _
    $region29: #{tpu_custom_call.1} parent=1 // pred_fallthru
      _
    // Predicated region
    $region30: #{tpu_custom_call.1} parent=1 // pred_check
      _
    $region31: #{tpu_custom_call.1} parent=1 // pred_check_branch
      %73 = sbr.rel (0) target = $region33
    $region32: #{tpu_custom_call.1} parent=1 // pred_region
      %75 = dma.done [#allocation3], 128
    $region33: #{tpu_custom_call.1} parent=1 // pred_fallthru
      _
    // Predicated region
    $region34: #{tpu_custom_call.1} parent=1 // pred_check
      _
    $region35: #{tpu_custom_call.1} parent=1 // pred_check_branch
      %77 = sbr.rel (0) target = $region37
    $region36: #{tpu_custom_call.1} parent=1 // pred_region
      %79 = dma.done [#allocation6], 2048
    $region37: #{tpu_custom_call.1} parent=1 // pred_fallthru
      _
    // Predicated region
    $region38: #{tpu_custom_call.1} parent=1 // pred_check
      _
    $region39: #{tpu_custom_call.1} parent=1 // pred_check_branch
      %81 = sbr.rel (0) target = $region41
    $region40: #{tpu_custom_call.1} parent=1 // pred_region
      %83 = dma.done [#allocation6], 4096
    $region41: #{tpu_custom_call.1} parent=1 // pred_fallthru
      _
    // Predicated region
    $region42: #{tpu_custom_call.1} parent=1 // pred_check
      _
    $region43: #{tpu_custom_call.1} parent=1 // pred_check_branch
      %85 = sbr.rel (0) target = $region45
    $region44: #{tpu_custom_call.1} parent=1 // pred_region
      %87 = dma.done [#allocation9], 2048
    $region45: #{tpu_custom_call.1} parent=1 // pred_fallthru
      _
    %v88 = vld [vmem:[#allocation2] sm:$0xff]
    %v89 = vld [vmem:[#allocation5] sm:$0xff]
    %v90 = vld [vmem:[#allocation5 + $0x8] sm:$0xff]
    %v91 = vld [vmem:[#allocation5 + $0x10] sm:$0xff]
    %v92 = vld [vmem:[#allocation5 + $0x18] sm:$0xff]
    %v93 = vld [vmem:[#allocation5 + $0x20] sm:$0xff]
    %v94 = vld [vmem:[#allocation5 + $0x28] sm:$0xff]
    %v95 = vld [vmem:[#allocation5 + $0x30] sm:$0xff]
    %v96 = vld [vmem:[#allocation5 + $0x38] sm:$0xff]
    %v97 = vld [vmem:[#allocation5 + $0x40] sm:$0xff]
    %v98 = vld [vmem:[#allocation5 + $0x48] sm:$0xff]
    %v99 = vld [vmem:[#allocation5 + $0x50] sm:$0xff]
    %v100 = vld [vmem:[#allocation5 + $0x58] sm:$0xff]
    %v101 = vld [vmem:[#allocation5 + $0x60] sm:$0xff]
    %v102 = vld [vmem:[#allocation5 + $0x68] sm:$0xff]
    %v103 = vld [vmem:[#allocation5 + $0x70] sm:$0xff]
    %v104 = vld [vmem:[#allocation5 + $0x78] sm:$0xff]
    %v105 = vld [vmem:[%s2] sm:$0x1]
    %v107 = vperm.slane %v105, 0
    %109 = vmatpush.msra.mxu0 %v104
    %110 = vmatpush.msra.mxu0 %v103
    %111 = vmatpush.msra.mxu0 %v102
    %112 = vmatpush.msra.mxu0 %v101
    %113 = vmatpush.msra.mxu0 %v100
    %114 = vmatpush.msra.mxu0 %v99
    %115 = vmatpush.msra.mxu0 %v98
    %116 = vmatpush.msra.mxu0 %v97
    %117 = vmatpush.msra.mxu0 %v96
    %118 = vmatpush.msra.mxu0 %v95
    %119 = vmatpush.msra.mxu0 %v94
    %120 = vmatpush.msra.mxu0 %v93
    %121 = vmatpush.msra.mxu0 %v92
    %122 = vmatpush.msra.mxu0 %v91
    %123 = vmatpush.msra.mxu0 %v90
    %124 = vmatpush.msra.mxu0 %v89
    %125 = vmatmul.f32.gmra.mxu0 %v88
    %v126 = vpop.f32.mrf.mxu0
    %v127 = vadd.f32 %v107, %v126
    %128 = vdwg.mxu0
    %v129 = vmul.f32 %v127, 0.5
    %v130 = vmul.f32 %v127, 0.70710677
    %v131 = vmul.f32 %v130, %v130
    %v132 = vmin.f32 16.0, %v131
    %v133 = vmul.f32 %v132, 2.1237322e-06
    %v134 = vadd.f32 %v133, 0.00028619796
    %v135 = vmul.f32 %v132, %v134
    %v136 = vadd.f32 %v135, 0.0036580483
    %v137 = vmul.f32 %v132, %v136
    %v138 = vadd.f32 %v137, 0.05243302
    %v139 = vmul.f32 %v132, %v138
    %v140 = vadd.f32 %v139, 0.18741608
    %v141 = vmul.f32 %v132, %v140
    %v142 = vadd.f32 %v141, 1.1283791
    %v143 = vmul.f32 %v130, %v142
    %v144 = vmul.f32 %v132, 3.8918573e-05
    %v145 = vadd.f32 %v144, 0.001143296
    %v146 = vmul.f32 %v132, %v145
    %v147 = vadd.f32 %v146, 0.014752088
    %v148 = vmul.f32 %v132, %v147
    %v149 = vadd.f32 %v148, 0.112945676
    %v150 = vmul.f32 %v132, %v149
    %v151 = vadd.f32 %v150, 0.4994258
    %v152 = vmul.f32 %v132, %v151
    %v153 = vadd.f32 %v152, 1.0
    %v154 = vrcp.pop %v153
    %v155 = vmul.f32 %v153, %v154
    %v156 = vsub.f32 1.0, %v155
    %v157 = vmul.f32 %v154, %v156
    %v158 = vadd.f32 %v154, %v157
    %vm159 = vweird.f32 %v153
    %vm160 = vweird.f32 %v154
    %vm161 = vmor %vm159, %vm160
    %v162 = vsel %vm161, %v154, %v158
    %v163 = vand.u32 2147483647, %v153
    %vm164 = vcmp.eq.f32.partialorder %v163, 8.507059e+37
    %v165 = vand.u32 %v153, 2147483648
    %v166 = vor.u32 1.1754944e-38, %v165
    %v167 = vsel %vm164, %v166, %v162
    %v168 = vmul.f32 %v143, %v167
    %v169 = vmin.f32 %v168, 1.0
    %v170 = vmax.f32 %v169, -1.0
    %v171 = vadd.f32 %v170, 1.0
    %v172 = vmul.f32 %v129, %v171
    loop: start=0, step=1, limit=2
    $region46: #{tpu_custom_call.1} parent=1 // loop_pre_header
      _
    $region47: #{tpu_custom_call.1} parent=1 // loop_header
      %s174 = sphi 0, %s178
      %p175 = scmp.ge.s32.totalorder %s174, 2
      %v179 = vphi %v172, %v267
    $region48: #{tpu_custom_call.1} parent=1 // loop_header_branch
      %177 = sbr.rel (%p175) target = $region52
    $region49: #{tpu_custom_call.1} parent=1 // loop_body
      %s180 = smul.u32 %s174, 128
      %s181 = scalar_lea.vmem [#allocation7], %s180
      %v182 = vld [vmem:[%s181] sm:$0xff]
      %v183 = vld [vmem:[%s181 + $0x8] sm:$0xff]
      %v184 = vld [vmem:[%s181 + $0x10] sm:$0xff]
      %v185 = vld [vmem:[%s181 + $0x18] sm:$0xff]
      %v186 = vld [vmem:[%s181 + $0x20] sm:$0xff]
      %v187 = vld [vmem:[%s181 + $0x28] sm:$0xff]
      %v188 = vld [vmem:[%s181 + $0x30] sm:$0xff]
      %v189 = vld [vmem:[%s181 + $0x38] sm:$0xff]
      %v190 = vld [vmem:[%s181 + $0x40] sm:$0xff]
      %v191 = vld [vmem:[%s181 + $0x48] sm:$0xff]
      %v192 = vld [vmem:[%s181 + $0x50] sm:$0xff]
      %v193 = vld [vmem:[%s181 + $0x58] sm:$0xff]
      %v194 = vld [vmem:[%s181 + $0x60] sm:$0xff]
      %v195 = vld [vmem:[%s181 + $0x68] sm:$0xff]
      %v196 = vld [vmem:[%s181 + $0x70] sm:$0xff]
      %v197 = vld [vmem:[%s181 + $0x78] sm:$0xff]
      %s198 = scalar_lea.vmem %s4, %s174
      %v199 = vld [vmem:[%s198] sm:$0x1]
      %v201 = vperm.slane %v199, 0
      %203 = vmatpush.msra.mxu0 %v197
      %204 = vmatpush.msra.mxu0 %v196
      %205 = vmatpush.msra.mxu0 %v195
      %206 = vmatpush.msra.mxu0 %v194
      %207 = vmatpush.msra.mxu0 %v193
      %208 = vmatpush.msra.mxu0 %v192
      %209 = vmatpush.msra.mxu0 %v191
      %210 = vmatpush.msra.mxu0 %v190
      %211 = vmatpush.msra.mxu0 %v189
      %212 = vmatpush.msra.mxu0 %v188
      %213 = vmatpush.msra.mxu0 %v187
      %214 = vmatpush.msra.mxu0 %v186
      %215 = vmatpush.msra.mxu0 %v185
      %216 = vmatpush.msra.mxu0 %v184
      %217 = vmatpush.msra.mxu0 %v183
      %218 = vmatpush.msra.mxu0 %v182
      %219 = vmatmul.f32.gmra.mxu0 %v179
      %v220 = vpop.f32.mrf.mxu0
      %v221 = vadd.f32 %v201, %v220
      %222 = vdwg.mxu0
      %v223 = vmul.f32 %v221, 0.5
      %v224 = vmul.f32 %v221, 0.70710677
      %v225 = vmul.f32 %v224, %v224
      %v226 = vmin.f32 16.0, %v225
      %v227 = vmul.f32 %v226, 2.1237322e-06
      %v228 = vadd.f32 %v227, 0.00028619796
      %v229 = vmul.f32 %v226, %v228
      %v230 = vadd.f32 %v229, 0.0036580483
      %v231 = vmul.f32 %v226, %v230
      %v232 = vadd.f32 %v231, 0.05243302
      %v233 = vmul.f32 %v226, %v232
      %v234 = vadd.f32 %v233, 0.18741608
      %v235 = vmul.f32 %v226, %v234
      %v236 = vadd.f32 %v235, 1.1283791
      %v237 = vmul.f32 %v224, %v236
      %v238 = vmul.f32 %v226, 3.8918573e-05
      %v239 = vadd.f32 %v238, 0.001143296
      %v240 = vmul.f32 %v226, %v239
      %v241 = vadd.f32 %v240, 0.014752088
      %v242 = vmul.f32 %v226, %v241
      %v243 = vadd.f32 %v242, 0.112945676
      %v244 = vmul.f32 %v226, %v243
      %v245 = vadd.f32 %v244, 0.4994258
      %v246 = vmul.f32 %v226, %v245
      %v247 = vadd.f32 %v246, 1.0
      %v248 = vrcp.pop %v247
      %v249 = vmul.f32 %v247, %v248
      %v250 = vsub.f32 1.0, %v249
      %v251 = vmul.f32 %v248, %v250
      %v252 = vadd.f32 %v248, %v251
      %vm253 = vweird.f32 %v247
      %vm254 = vweird.f32 %v248
      %vm255 = vmor %vm253, %vm254
      %v256 = vsel %vm255, %v248, %v252
      %v257 = vand.u32 2147483647, %v247
      %vm258 = vcmp.eq.f32.partialorder %v257, 8.507059e+37
      %v259 = vand.u32 %v247, 2147483648
      %v260 = vor.u32 1.1754944e-38, %v259
      %v261 = vsel %vm258, %v260, %v256
      %v262 = vmul.f32 %v237, %v261
      %v263 = vmin.f32 %v262, 1.0
      %v264 = vmax.f32 %v263, -1.0
      %v265 = vadd.f32 %v264, 1.0
      %v266 = vmul.f32 %v223, %v265
      %v267 = vadd.f32 %v179, %v266
    $region50: #{tpu_custom_call.1} parent=1 // loop_footer
      %s178 = sadd.s32 1, %s174
    $region51: #{tpu_custom_call.1} parent=1 // loop_footer_branch
      %173 = sbr.rel target = $region47
    $region52: #{tpu_custom_call.1} parent=1 // loop_exit
      _
    %v268 = vld [vmem:[#allocation8] sm:$0xff]
    %v269 = vld [vmem:[#allocation8 + $0x8] sm:$0xff]
    %v270 = vld [vmem:[#allocation8 + $0x10] sm:$0xff]
    %v271 = vld [vmem:[#allocation8 + $0x18] sm:$0xff]
    %v272 = vld [vmem:[#allocation8 + $0x20] sm:$0xff]
    %v273 = vld [vmem:[#allocation8 + $0x28] sm:$0xff]
    %v274 = vld [vmem:[#allocation8 + $0x30] sm:$0xff]
    %v275 = vld [vmem:[#allocation8 + $0x38] sm:$0xff]
    %v276 = vld [vmem:[#allocation8 + $0x40] sm:$0xff]
    %v277 = vld [vmem:[#allocation8 + $0x48] sm:$0xff]
    %v278 = vld [vmem:[#allocation8 + $0x50] sm:$0xff]
    %v279 = vld [vmem:[#allocation8 + $0x58] sm:$0xff]
    %v280 = vld [vmem:[#allocation8 + $0x60] sm:$0xff]
    %v281 = vld [vmem:[#allocation8 + $0x68] sm:$0xff]
    %v282 = vld [vmem:[#allocation8 + $0x70] sm:$0xff]
    %v283 = vld [vmem:[#allocation8 + $0x78] sm:$0xff]
    %v284 = vld [vmem:[%s6] sm:$0x1]
    %v286 = vperm.slane %v284, 0
    %288 = vmatpush.msra.mxu0 %v283
    %289 = vmatpush.msra.mxu0 %v282
    %290 = vmatpush.msra.mxu0 %v281
    %291 = vmatpush.msra.mxu0 %v280
    %292 = vmatpush.msra.mxu0 %v279
    %293 = vmatpush.msra.mxu0 %v278
    %294 = vmatpush.msra.mxu0 %v277
    %295 = vmatpush.msra.mxu0 %v276
    %296 = vmatpush.msra.mxu0 %v275
    %297 = vmatpush.msra.mxu0 %v274
    %298 = vmatpush.msra.mxu0 %v273
    %299 = vmatpush.msra.mxu0 %v272
    %300 = vmatpush.msra.mxu0 %v271
    %301 = vmatpush.msra.mxu0 %v270
    %302 = vmatpush.msra.mxu0 %v269
    %303 = vmatpush.msra.mxu0 %v268
    %304 = vmatmul.f32.gmra.mxu0 %v179
    %v305 = vpop.f32.mrf.mxu0
    %v306 = vadd.f32 %v286, %v305
    %307 = vdwg.mxu0
    %308 = vst [vmem:[#allocation10] sm:$0xff] %v306
    // Predicated region
    $region53: #{tpu_custom_call.1} parent=1 // pred_check
      _
    $region54: #{tpu_custom_call.1} parent=1 // pred_check_branch
      %310 = sbr.rel (0) target = $region56
    $region55: #{tpu_custom_call.1} parent=1 // pred_region
      %312 = vsyncadd [#allocation4], 0
      %s314 = sshll.u32 [#allocation10], 4
      %s315 = int_to_ptr.vmem [resolvable:$true] %s314
      %s316 = sshll.u32 %s7, 4
      %s317 = int_to_ptr.hbm [resolvable:$true] %s316
      %319 = dma.vmem_to_hbm [thread:$0]  %s315, 128, %s317, [#allocation4]
    $region56: #{tpu_custom_call.1} parent=1 // pred_fallthru
      _
    // Predicated region
    $region57: #{tpu_custom_call.1} parent=1 // pred_check
      _
    $region58: #{tpu_custom_call.1} parent=1 // pred_check_branch
      %321 = sbr.rel (0) target = $region60
    $region59: #{tpu_custom_call.1} parent=1 // pred_region
      %323 = dma.done [#allocation4], 128
    $region60: #{tpu_custom_call.1} parent=1 // pred_fallthru
      _
    %324 = vsyncpa [#allocation3], 1
    %325 = vsyncpa [#allocation6], 1
    %326 = vsyncpa [#allocation9], 1
    %327 = vsyncpa [#allocation4], 1

// kernel: tpu_custom_call.1
$region0: #{tpu_custom_call.1}
  #allocation0 [shape = 'u32[]', space=smem, size = 0x4, offset = 0x4, fixed_abs, tag = 'smem constant byte address 0x4 - core index']
  #allocation1 [shape = 'u32[72,128]{1,0:T(1,128)}', space=vmem, size = 0x9000, scoped, tag = 'internal scratch']
  %s0 = inlined_call_operand.hbm [shape: f32[8,128], index: 0, kind: input, shape index: {}]
  %s1 = inlined_call_operand.hbm [shape: f32[128,128], index: 1, kind: input, shape index: {}]
  %s2 = inlined_call_operand.vmem [shape: f32[1,128], index: 2, kind: input, shape index: {}]
  %s3 = inlined_call_operand.hbm [shape: f32[2,128,128], index: 3, kind: input, shape index: {}]
  %s4 = inlined_call_operand.vmem [shape: f32[2,1,128], index: 4, kind: input, shape index: {}]
  %s5 = inlined_call_operand.hbm [shape: f32[128,128], index: 5, kind: input, shape index: {}]
  %s6 = inlined_call_operand.vmem [shape: f32[1,128], index: 6, kind: input, shape index: {}]
  %s7 = inlined_call_operand.hbm [shape: f32[8,128], index: 7, kind: output, shape index: {}]
  %s8 = sld [smem:[#allocation0]]
  $region61: #{tpu_custom_call.1} parent=0
    _
  %s10 = ssub.s32 1, %s8
  %s11 = scalar_select 0, %s10, %s8
  $region1: #{tpu_custom_call.1} parent=0
    #allocation2 [shape = 'u8[4096]{0}', space=vmem, size = 0x1000, scoped, tag = 'input window, operand 0, single buffered']
    #allocation3 [shape = 's32[1]{0}', space=sflag, size = 0x4, scoped, tag = 'scoped memory for tpu_custom_call.1']
    #allocation4 [shape = 's32[1]{0}', space=sflag, size = 0x4, scoped, tag = 'scoped memory for tpu_custom_call.1']
    #allocation5 [shape = 'u8[65536]{0}', space=vmem, size = 0x10000, scoped, tag = 'input window, operand 1, single buffered']
    #allocation6 [shape = 's32[1]{0}', space=sflag, size = 0x4, scoped, tag = 'scoped memory for tpu_custom_call.1']
    #allocation7 [shape = 'u8[131072]{0}', space=vmem, size = 0x20000, scoped, tag = 'input window, operand 3, single buffered']
    #allocation8 [shape = 'u8[65536]{0}', space=vmem, size = 0x10000, scoped, tag = 'input window, operand 5, single buffered']
    #allocation9 [shape = 's32[1]{0}', space=sflag, size = 0x4, scoped, tag = 'scoped memory for tpu_custom_call.1']
    #allocation10 [shape = 'u8[4096]{0}', space=vmem, size = 0x1000, scoped, tag = 'output window, operand 0, single buffered']
    %12 = vsyncpa [#allocation3], 0
    %13 = vsyncpa [#allocation6], 0
    %14 = vsyncpa [#allocation9], 0
    %15 = vsyncpa [#allocation4], 0
    // Predicated region
    $region2: #{tpu_custom_call.1} parent=1 // pred_check
      _
    $region3: #{tpu_custom_call.1} parent=1 // pred_check_branch
      %17 = sbr.rel (0) target = $region5
    $region4: #{tpu_custom_call.1} parent=1 // pred_region
      %19 = vsyncadd [#allocation3], 0
      %s21 = sshll.u32 %s0, 4
      %s22 = int_to_ptr.hbm [resolvable:$true] %s21
      %s23 = sshll.u32 [#allocation2], 4
      %s24 = int_to_ptr.vmem [resolvable:$true] %s23
      %26 = dma.hbm_to_vmem [thread:$0]  %s22, 128, %s24, [#allocation3]
    $region5: #{tpu_custom_call.1} parent=1 // pred_fallthru
      _
    // Predicated region
    $region6: #{tpu_custom_call.1} parent=1 // pred_check
      _
    $region7: #{tpu_custom_call.1} parent=1 // pred_check_branch
      %28 = sbr.rel (0) target = $region9
    $region8: #{tpu_custom_call.1} parent=1 // pred_region
      %30 = vsyncadd [#allocation6], 0
      %s31 = sshll.u32 %s1, 4
      %s32 = int_to_ptr.hbm [resolvable:$true] %s31
      %s33 = sshll.u32 [#allocation5], 4
      %s34 = int_to_ptr.vmem [resolvable:$true] %s33
      %39 = dma.hbm_to_vmem [thread:$0]  %s32, 2048, %s34, [#allocation6], 128, 128, 8
    $region9: #{tpu_custom_call.1} parent=1 // pred_fallthru
      _
    // Predicated region
    $region10: #{tpu_custom_call.1} parent=1 // pred_check
      _
    $region11: #{tpu_custom_call.1} parent=1 // pred_check_branch
      %41 = sbr.rel (0) target = $region13
    $region12: #{tpu_custom_call.1} parent=1 // pred_region
      _
    $region13: #{tpu_custom_call.1} parent=1 // pred_fallthru
      _
    // Predicated region
    $region14: #{tpu_custom_call.1} parent=1 // pred_check
      _
    $region15: #{tpu_custom_call.1} parent=1 // pred_check_branch
      %43 = sbr.rel (0) target = $region17
    $region16: #{tpu_custom_call.1} parent=1 // pred_region
      %45 = vsyncadd [#allocation6], 0
      %s46 = sshll.u32 %s3, 4
      %s47 = int_to_ptr.hbm [resolvable:$true] %s46
      %s48 = sshll.u32 [#allocation7], 4
      %s49 = int_to_ptr.vmem [resolvable:$true] %s48
      %54 = dma.hbm_to_vmem [thread:$0]  %s47, 4096, %s49, [#allocation6], 128, 128, 8
    $region17: #{tpu_custom_call.1} parent=1 // pred_fallthru
      _
    // Predicated region
    $region18: #{tpu_custom_call.1} parent=1 // pred_check
      _
    $region19: #{tpu_custom_call.1} parent=1 // pred_check_branch
      %56 = sbr.rel (0) target = $region21
    $region20: #{tpu_custom_call.1} parent=1 // pred_region
      _
    $region21: #{tpu_custom_call.1} parent=1 // pred_fallthru
      _
    // Predicated region
    $region22: #{tpu_custom_call.1} parent=1 // pred_check
      _
    $region23: #{tpu_custom_call.1} parent=1 // pred_check_branch
      %58 = sbr.rel (0) target = $region25
    $region24: #{tpu_custom_call.1} parent=1 // pred_region
      %60 = vsyncadd [#allocation9], 0
      %s61 = sshll.u32 %s5, 4
      %s62 = int_to_ptr.hbm [resolvable:$true] %s61
      %s63 = sshll.u32 [#allocation8], 4
      %s64 = int_to_ptr.vmem [resolvable:$true] %s63
      %69 = dma.hbm_to_vmem [thread:$0]  %s62, 2048, %s64, [#allocation9], 128, 128, 8
    $region25: #{tpu_custom_call.1} parent=1 // pred_fallthru
      _
    // Predicated region
    $region26: #{tpu_custom_call.1} parent=1 // pred_check
      _
    $region27: #{tpu_custom_call.1} parent=1 // pred_check_branch
      %71 = sbr.rel (0) target = $region29
    $region28: #{tpu_custom_call.1} parent=1 // pred_region
      _
    $region29: #{tpu_custom_call.1} parent=1 // pred_fallthru
      _
    // Predicated region
    $region30: #{tpu_custom_call.1} parent=1 // pred_check
      _
    $region31: #{tpu_custom_call.1} parent=1 // pred_check_branch
      %73 = sbr.rel (0) target = $region33
    $region32: #{tpu_custom_call.1} parent=1 // pred_region
      %75 = dma.done [#allocation3], 128
    $region33: #{tpu_custom_call.1} parent=1 // pred_fallthru
      _
    // Predicated region
    $region34: #{tpu_custom_call.1} parent=1 // pred_check
      _
    $region35: #{tpu_custom_call.1} parent=1 // pred_check_branch
      %77 = sbr.rel (0) target = $region37
    $region36: #{tpu_custom_call.1} parent=1 // pred_region
      %79 = dma.done [#allocation6], 2048
    $region37: #{tpu_custom_call.1} parent=1 // pred_fallthru
      _
    // Predicated region
    $region38: #{tpu_custom_call.1} parent=1 // pred_check
      _
    $region39: #{tpu_custom_call.1} parent=1 // pred_check_branch
      %81 = sbr.rel (0) target = $region41
    $region40: #{tpu_custom_call.1} parent=1 // pred_region
      %83 = dma.done [#allocation6], 4096
    $region41: #{tpu_custom_call.1} parent=1 // pred_fallthru
      _
    // Predicated region
    $region42: #{tpu_custom_call.1} parent=1 // pred_check
      _
    $region43: #{tpu_custom_call.1} parent=1 // pred_check_branch
      %85 = sbr.rel (0) target = $region45
    $region44: #{tpu_custom_call.1} parent=1 // pred_region
      %87 = dma.done [#allocation9], 2048
    $region45: #{tpu_custom_call.1} parent=1 // pred_fallthru
      _
    %v88 = vld [vmem:[#allocation2] sm:$0xff]
    %v89 = vld [vmem:[#allocation5] sm:$0xff]
    %v90 = vld [vmem:[#allocation5 + $0x8] sm:$0xff]
    %v91 = vld [vmem:[#allocation5 + $0x10] sm:$0xff]
    %v92 = vld [vmem:[#allocation5 + $0x18] sm:$0xff]
    %v93 = vld [vmem:[#allocation5 + $0x20] sm:$0xff]
    %v94 = vld [vmem:[#allocation5 + $0x28] sm:$0xff]
    %v95 = vld [vmem:[#allocation5 + $0x30] sm:$0xff]
    %v96 = vld [vmem:[#allocation5 + $0x38] sm:$0xff]
    %v97 = vld [vmem:[#allocation5 + $0x40] sm:$0xff]
    %v98 = vld [vmem:[#allocation5 + $0x48] sm:$0xff]
    %v99 = vld [vmem:[#allocation5 + $0x50] sm:$0xff]
    %v100 = vld [vmem:[#allocation5 + $0x58] sm:$0xff]
    %v101 = vld [vmem:[#allocation5 + $0x60] sm:$0xff]
    %v102 = vld [vmem:[#allocation5 + $0x68] sm:$0xff]
    %v103 = vld [vmem:[#allocation5 + $0x70] sm:$0xff]
    %v104 = vld [vmem:[#allocation5 + $0x78] sm:$0xff]
    %v105 = vld [vmem:[%s2] sm:$0x1]
    %v107 = vperm.slane %v105, 0
    %109 = vmatpush.msra.mxu0 %v104
    %110 = vmatpush.msra.mxu0 %v103
    %111 = vmatpush.msra.mxu0 %v102
    %112 = vmatpush.msra.mxu0 %v101
    %113 = vmatpush.msra.mxu0 %v100
    %114 = vmatpush.msra.mxu0 %v99
    %115 = vmatpush.msra.mxu0 %v98
    %116 = vmatpush.msra.mxu0 %v97
    %117 = vmatpush.msra.mxu0 %v96
    %118 = vmatpush.msra.mxu0 %v95
    %119 = vmatpush.msra.mxu0 %v94
    %120 = vmatpush.msra.mxu0 %v93
    %121 = vmatpush.msra.mxu0 %v92
    %122 = vmatpush.msra.mxu0 %v91
    %123 = vmatpush.msra.mxu0 %v90
    %124 = vmatpush.msra.mxu0 %v89
    %125 = vmatmul.f32.gmra.mxu0 %v88
    %v126 = vpop.f32.mrf.mxu0
    %v127 = vadd.f32 %v107, %v126
    %128 = vdwg.mxu0
    %v129 = vmul.f32 %v127, 0.5
    %v130 = vmul.f32 %v127, 0.70710677
    %v131 = vmul.f32 %v130, %v130
    %v132 = vmin.f32 16.0, %v131
    %v133 = vmul.f32 %v132, 2.1237322e-06
    %v134 = vadd.f32 %v133, 0.00028619796
    %v135 = vmul.f32 %v132, %v134
    %v136 = vadd.f32 %v135, 0.0036580483
    %v137 = vmul.f32 %v132, %v136
    %v138 = vadd.f32 %v137, 0.05243302
    %v139 = vmul.f32 %v132, %v138
    %v140 = vadd.f32 %v139, 0.18741608
    %v141 = vmul.f32 %v132, %v140
    %v142 = vadd.f32 %v141, 1.1283791
    %v143 = vmul.f32 %v130, %v142
    %v144 = vmul.f32 %v132, 3.8918573e-05
    %v145 = vadd.f32 %v144, 0.001143296
    %v146 = vmul.f32 %v132, %v145
    %v147 = vadd.f32 %v146, 0.014752088
    %v148 = vmul.f32 %v132, %v147
    %v149 = vadd.f32 %v148, 0.112945676
    %v150 = vmul.f32 %v132, %v149
    %v151 = vadd.f32 %v150, 0.4994258
    %v152 = vmul.f32 %v132, %v151
    %v153 = vadd.f32 %v152, 1.0
    %v154 = vrcp.pop %v153
    %v155 = vmul.f32 %v153, %v154
    %v156 = vsub.f32 1.0, %v155
    %v157 = vmul.f32 %v154, %v156
    %v158 = vadd.f32 %v154, %v157
    %vm159 = vweird.f32 %v153
    %vm160 = vweird.f32 %v154
    %vm161 = vmor %vm159, %vm160
    %v162 = vsel %vm161, %v154, %v158
    %v163 = vand.u32 2147483647, %v153
    %vm164 = vcmp.eq.f32.partialorder %v163, 8.507059e+37
    %v165 = vand.u32 %v153, 2147483648
    %v166 = vor.u32 1.1754944e-38, %v165
    %v167 = vsel %vm164, %v166, %v162
    %v168 = vmul.f32 %v143, %v167
    %v169 = vmin.f32 %v168, 1.0
    %v170 = vmax.f32 %v169, -1.0
    %v171 = vadd.f32 %v170, 1.0
    %v172 = vmul.f32 %v129, %v171
    loop: start=0, step=1, limit=2
    $region46: #{tpu_custom_call.1} parent=1 // loop_pre_header
      _
    $region47: #{tpu_custom_call.1} parent=1 // loop_header
      %s174 = sphi 0, %s178
      %p175 = scmp.ge.s32.totalorder %s174, 2
      %v179 = vphi %v172, %v267
    $region48: #{tpu_custom_call.1} parent=1 // loop_header_branch
      %177 = sbr.rel (%p175) target = $region52
    $region49: #{tpu_custom_call.1} parent=1 // loop_body
      %s180 = smul.u32 %s174, 128
      %s181 = scalar_lea.vmem [#allocation7], %s180
      %v182 = vld [vmem:[%s181] sm:$0xff]
      %v183 = vld [vmem:[%s181 + $0x8] sm:$0xff]
      %v184 = vld [vmem:[%s181 + $0x10] sm:$0xff]
      %v185 = vld [vmem:[%s181 + $0x18] sm:$0xff]
      %v186 = vld [vmem:[%s181 + $0x20] sm:$0xff]
      %v187 = vld [vmem:[%s181 + $0x28] sm:$0xff]
      %v188 = vld [vmem:[%s181 + $0x30] sm:$0xff]
      %v189 = vld [vmem:[%s181 + $0x38] sm:$0xff]
      %v190 = vld [vmem:[%s181 + $0x40] sm:$0xff]
      %v191 = vld [vmem:[%s181 + $0x48] sm:$0xff]
      %v192 = vld [vmem:[%s181 + $0x50] sm:$0xff]
      %v193 = vld [vmem:[%s181 + $0x58] sm:$0xff]
      %v194 = vld [vmem:[%s181 + $0x60] sm:$0xff]
      %v195 = vld [vmem:[%s181 + $0x68] sm:$0xff]
      %v196 = vld [vmem:[%s181 + $0x70] sm:$0xff]
      %v197 = vld [vmem:[%s181 + $0x78] sm:$0xff]
      %s198 = scalar_lea.vmem %s4, %s174
      %v199 = vld [vmem:[%s198] sm:$0x1]
      %v201 = vperm.slane %v199, 0
      %203 = vmatpush.msra.mxu0 %v197
      %204 = vmatpush.msra.mxu0 %v196
      %205 = vmatpush.msra.mxu0 %v195
      %206 = vmatpush.msra.mxu0 %v194
      %207 = vmatpush.msra.mxu0 %v193
      %208 = vmatpush.msra.mxu0 %v192
      %209 = vmatpush.msra.mxu0 %v191
      %210 = vmatpush.msra.mxu0 %v190
      %211 = vmatpush.msra.mxu0 %v189
      %212 = vmatpush.msra.mxu0 %v188
      %213 = vmatpush.msra.mxu0 %v187
      %214 = vmatpush.msra.mxu0 %v186
      %215 = vmatpush.msra.mxu0 %v185
      %216 = vmatpush.msra.mxu0 %v184
      %217 = vmatpush.msra.mxu0 %v183
      %218 = vmatpush.msra.mxu0 %v182
      %219 = vmatmul.f32.gmra.mxu0 %v179
      %v220 = vpop.f32.mrf.mxu0
      %v221 = vadd.f32 %v201, %v220
      %222 = vdwg.mxu0
      %v223 = vmul.f32 %v221, 0.5
      %v224 = vmul.f32 %v221, 0.70710677
      %v225 = vmul.f32 %v224, %v224
      %v226 = vmin.f32 16.0, %v225
      %v227 = vmul.f32 %v226, 2.1237322e-06
      %v228 = vadd.f32 %v227, 0.00028619796
      %v229 = vmul.f32 %v226, %v228
      %v230 = vadd.f32 %v229, 0.0036580483
      %v231 = vmul.f32 %v226, %v230
      %v232 = vadd.f32 %v231, 0.05243302
      %v233 = vmul.f32 %v226, %v232
      %v234 = vadd.f32 %v233, 0.18741608
      %v235 = vmul.f32 %v226, %v234
      %v236 = vadd.f32 %v235, 1.1283791
      %v237 = vmul.f32 %v224, %v236
      %v238 = vmul.f32 %v226, 3.8918573e-05
      %v239 = vadd.f32 %v238, 0.001143296
      %v240 = vmul.f32 %v226, %v239
      %v241 = vadd.f32 %v240, 0.014752088
      %v242 = vmul.f32 %v226, %v241
      %v243 = vadd.f32 %v242, 0.112945676
      %v244 = vmul.f32 %v226, %v243
      %v245 = vadd.f32 %v244, 0.4994258
      %v246 = vmul.f32 %v226, %v245
      %v247 = vadd.f32 %v246, 1.0
      %v248 = vrcp.pop %v247
      %v249 = vmul.f32 %v247, %v248
      %v250 = vsub.f32 1.0, %v249
      %v251 = vmul.f32 %v248, %v250
      %v252 = vadd.f32 %v248, %v251
      %vm253 = vweird.f32 %v247
      %vm254 = vweird.f32 %v248
      %vm255 = vmor %vm253, %vm254
      %v256 = vsel %vm255, %v248, %v252
      %v257 = vand.u32 2147483647, %v247
      %vm258 = vcmp.eq.f32.partialorder %v257, 8.507059e+37
      %v259 = vand.u32 %v247, 2147483648
      %v260 = vor.u32 1.1754944e-38, %v259
      %v261 = vsel %vm258, %v260, %v256
      %v262 = vmul.f32 %v237, %v261
      %v263 = vmin.f32 %v262, 1.0
      %v264 = vmax.f32 %v263, -1.0
      %v265 = vadd.f32 %v264, 1.0
      %v266 = vmul.f32 %v223, %v265
      %v267 = vadd.f32 %v179, %v266
    $region50: #{tpu_custom_call.1} parent=1 // loop_footer
      %s178 = sadd.s32 1, %s174
    $region51: #{tpu_custom_call.1} parent=1 // loop_footer_branch
      %173 = sbr.rel target = $region47
    $region52: #{tpu_custom_call.1} parent=1 // loop_exit
      _
    %v268 = vld [vmem:[#allocation8] sm:$0xff]
    %v269 = vld [vmem:[#allocation8 + $0x8] sm:$0xff]
    %v270 = vld [vmem:[#allocation8 + $0x10] sm:$0xff]
    %v271 = vld [vmem:[#allocation8 + $0x18] sm:$0xff]
    %v272 = vld [vmem:[#allocation8 + $0x20] sm:$0xff]
    %v273 = vld [vmem:[#allocation8 + $0x28] sm:$0xff]
    %v274 = vld [vmem:[#allocation8 + $0x30] sm:$0xff]
    %v275 = vld [vmem:[#allocation8 + $0x38] sm:$0xff]
    %v276 = vld [vmem:[#allocation8 + $0x40] sm:$0xff]
    %v277 = vld [vmem:[#allocation8 + $0x48] sm:$0xff]
    %v278 = vld [vmem:[#allocation8 + $0x50] sm:$0xff]
    %v279 = vld [vmem:[#allocation8 + $0x58] sm:$0xff]
    %v280 = vld [vmem:[#allocation8 + $0x60] sm:$0xff]
    %v281 = vld [vmem:[#allocation8 + $0x68] sm:$0xff]
    %v282 = vld [vmem:[#allocation8 + $0x70] sm:$0xff]
    %v283 = vld [vmem:[#allocation8 + $0x78] sm:$0xff]
    %v284 = vld [vmem:[%s6] sm:$0x1]
    %v286 = vperm.slane %v284, 0
    %288 = vmatpush.msra.mxu0 %v283
    %289 = vmatpush.msra.mxu0 %v282
    %290 = vmatpush.msra.mxu0 %v281
    %291 = vmatpush.msra.mxu0 %v280
    %292 = vmatpush.msra.mxu0 %v279
    %293 = vmatpush.msra.mxu0 %v278
    %294 = vmatpush.msra.mxu0 %v277
    %295 = vmatpush.msra.mxu0 %v276
    %296 = vmatpush.msra.mxu0 %v275
    %297 = vmatpush.msra.mxu0 %v274
    %298 = vmatpush.msra.mxu0 %v273
    %299 = vmatpush.msra.mxu0 %v272
    %300 = vmatpush.msra.mxu0 %v271
    %301 = vmatpush.msra.mxu0 %v270
    %302 = vmatpush.msra.mxu0 %v269
    %303 = vmatpush.msra.mxu0 %v268
    %304 = vmatmul.f32.gmra.mxu0 %v179
    %v305 = vpop.f32.mrf.mxu0
    %v306 = vadd.f32 %v286, %v305
    %307 = vdwg.mxu0
    %308 = vst [vmem:[#allocation10] sm:$0xff] %v306
    // Predicated region
    $region53: #{tpu_custom_call.1} parent=1 // pred_check
      _
    $region54: #{tpu_custom_call.1} parent=1 // pred_check_branch
      %310 = sbr.rel (0) target = $region56
    $region55: #{tpu_custom_call.1} parent=1 // pred_region
      %312 = vsyncadd [#allocation4], 0
      %s314 = sshll.u32 [#allocation10], 4
      %s315 = int_to_ptr.vmem [resolvable:$true] %s314
      %s316 = sshll.u32 %s7, 4
      %s317 = int_to_ptr.hbm [resolvable:$true] %s316
      %319 = dma.vmem_to_hbm [thread:$0]  %s315, 128, %s317, [#allocation4]
    $region56: #{tpu_custom_call.1} parent=1 // pred_fallthru
      _
    // Predicated region
    $region57: #{tpu_custom_call.1} parent=1 // pred_check
      _
    $region58: #{tpu_custom_call.1} parent=1 // pred_check_branch
      %321 = sbr.rel (0) target = $region60
    $region59: #{tpu_custom_call.1} parent=1 // pred_region
      %323 = dma.done [#allocation4], 128
    $region60: #{tpu_custom_call.1} parent=1 // pred_fallthru
      _
    %324 = vsyncpa [#allocation3], 1
    %325 = vsyncpa [#allocation6], 1
    %326 = vsyncpa [#allocation9], 1
    %327 = vsyncpa [#allocation4], 1

</llo_original>
